<compile_context>
chip_gen: v5e
topology: v5e:2x2
jax: 0.10.0
libtpu: 0.0.40
codegen_flags: <defaults>
</compile_context>

<pallas_src>
import jax
import jax.numpy as jnp
from jax.experimental import pallas as pl
from jax.experimental.pallas import tpu as pltpu


def _round_up(x, m):
    return ((x + m - 1) // m) * m


def rnn_direct_kernel(x_ref, h0_ref, wih_ref, whh_ref, bias_ref,
                      dec_w_ref, dec_b_ref, out_ref, pre_ref):
    """Whole forward pass in one invocation.

    x_ref   : (T*Bp, U)   time-flattened, batch-padded inputs
    h0_ref  : (Bp, Hp)    padded initial hidden state
    wih_ref : (U, Hp)     W_ih^T (zero-padded)
    whh_ref : (Hp, Hp)    W_hh^T (zero-padded)
    bias_ref: (1, Hp)     b_ih + b_hh (zero-padded)
    dec_w_ref:(Hp, Op)    A^T (zero-padded)
    dec_b_ref:(1, Op)     b_A (zero-padded)
    out_ref : (Bp, Op)    lane-dense decoder output
    pre_ref : (T*Bp, Hp)  VMEM scratch for the hoisted input projection
    """
    Bp = h0_ref.shape[0]
    T = x_ref.shape[0] // Bp

    # Time-parallel input projection, one MXU matmul for all T steps, with both
    # RNN biases folded in (removes a matmul + bias broadcast from the serial
    # critical path).
    pre_ref[...] = (jnp.dot(x_ref[...], wih_ref[...],
                            preferred_element_type=jnp.float32)
                    + bias_ref[...])

    whh = whh_ref[...]  # recurrent weight, loaded once

    def step(t, h):
        start = pl.multiple_of(t * Bp, Bp)           # sublane-aligned dynamic slice
        pre_t = pre_ref[pl.ds(start, Bp), :]         # (Bp, Hp)
        return jnp.tanh(pre_t
                        + jnp.dot(h, whh, preferred_element_type=jnp.float32))

    # Serial recurrence; hidden state stays in vregs as the loop carry.
    h_t = jax.lax.fori_loop(0, T, step, h0_ref[...], unroll=True)

    # Lane-dense decoder (O padded to a multiple of 128 -> unmasked stores).
    out_ref[...] = (jnp.dot(h_t, dec_w_ref[...],
                            preferred_element_type=jnp.float32)
                    + dec_b_ref[...])


def rnn_direct_forward(past_features, params, forecast_horizon, n_features_Y):
    """past_features: (T, B, U) float32 (time-major, like torch nn.RNN default).

    Returns (forecast_horizon, -1, n_features_Y), matching the PyTorch reshape.
    """
    T, B, U = past_features.shape
    H = params["w_hh"].shape[0]
    O = params["dec_w"].shape[0]          # n_features_Y * forecast_horizon

    f32 = jnp.float32
    Bp = _round_up(max(B, 8), 8)          # sublane multiple
    Hp = _round_up(H, 128)                # lane multiple
    Op = _round_up(O, 128)                # lane-dense decoder output

    # Zero-pad everything in the wrapper (free XLA ops on tiny tensors).
    x_pad = jnp.zeros((T, Bp, U), f32).at[:, :B, :].set(past_features.astype(f32))
    x_flat = x_pad.reshape(T * Bp, U)

    wih_t = jnp.zeros((U, Hp), f32).at[:, :H].set(params["w_ih"].T)
    whh_t = jnp.zeros((Hp, Hp), f32).at[:H, :H].set(params["w_hh"].T)
    bias = jnp.zeros((1, Hp), f32).at[0, :H].set(params["b_ih"] + params["b_hh"])
    dec_w_t = jnp.zeros((Hp, Op), f32).at[:H, :O].set(params["dec_w"].T)
    dec_b = jnp.zeros((1, Op), f32).at[0, :O].set(params["dec_b"])
    h0 = jnp.zeros((Bp, Hp), f32).at[:, :H].set(
        jnp.broadcast_to(params["init_state"], (Bp, H)))   # repeat_init_state

    vmem = pl.BlockSpec(memory_space=pltpu.MemorySpace.VMEM)
    out = pl.pallas_call(
        rnn_direct_kernel,
        out_shape=jax.ShapeDtypeStruct((Bp, Op), f32),
        in_specs=[vmem] * 7,
        out_specs=vmem,
        scratch_shapes=[pltpu.VMEM((T * Bp, Hp), f32)],
    )(x_flat, h0, wih_t, whh_t, bias, dec_w_t, dec_b)

    forecast = out[:B, :O]
    # Raw row-major reshape (horizon interleaved with batch), exactly as PyTorch.
    return forecast.reshape(forecast_horizon, -1, n_features_Y)


def reference_forward(past_features, params, forecast_horizon, n_features_Y):
    """Pure-JAX reference mirroring nn.RNN(tanh) + Linear."""
    B = past_features.shape[1]
    H = params["w_hh"].shape[0]
    h0 = jnp.broadcast_to(params["init_state"], (B, H))

    def step(h, x_t):
        h_new = jnp.tanh(x_t @ params["w_ih"].T + params["b_ih"]
                         + h @ params["w_hh"].T + params["b_hh"])
        return h_new, None

    h_T, _ = jax.lax.scan(step, h0, past_features)
    forecast = h_T @ params["dec_w"].T + params["dec_b"]
    return forecast.reshape(forecast_horizon, -1, n_features_Y)


def init_params(key, n_features_U, n_state_neurons, n_features_Y, forecast_horizon):
    H, U = n_state_neurons, n_features_U
    O = n_features_Y * forecast_horizon
    ks = jax.random.split(key, 7)
    scale_rnn = 1.0 / jnp.sqrt(H)
    scale_dec = 1.0 / jnp.sqrt(H)
    return {
        "w_ih": jax.random.uniform(ks[0], (H, U), jnp.float32, -scale_rnn, scale_rnn),
        "w_hh": jax.random.uniform(ks[1], (H, H), jnp.float32, -scale_rnn, scale_rnn),
        "b_ih": jax.random.uniform(ks[2], (H,), jnp.float32, -scale_rnn, scale_rnn),
        "b_hh": jax.random.uniform(ks[3], (H,), jnp.float32, -scale_rnn, scale_rnn),
        "dec_w": jax.random.uniform(ks[4], (O, H), jnp.float32, -scale_dec, scale_dec),
        "dec_b": jax.random.uniform(ks[5], (O,), jnp.float32, -scale_dec, scale_dec),
        "init_state": jax.random.uniform(ks[6], (1, H), jnp.float32, 0.0, 1.0),
    }


if __name__ == "__main__":
    # Small, module-consistent shapes.
    n_features_U = 4
    n_state_neurons = 32
    n_features_Y = 3
    forecast_horizon = 4
    seq_len = 8
    batch = 2

    key = jax.random.PRNGKey(0)
    k_param, k_x = jax.random.split(key)
    params = init_params(k_param, n_features_U, n_state_neurons,
                         n_features_Y, forecast_horizon)

    # layout: (seq_len, batch, n_features_U), time-major like torch nn.RNN default.
    past_features = jax.random.normal(k_x, (seq_len, batch, n_features_U), jnp.float32)

    out = rnn_direct_forward(past_features, params, forecast_horizon, n_features_Y)
    out = jax.block_until_ready(out)

    ref = reference_forward(past_features, params, forecast_horizon, n_features_Y)
    assert out.shape == (forecast_horizon, batch, n_features_Y), out.shape
    assert jnp.allclose(out, ref, atol=1e-5, rtol=1e-5), "mismatch vs reference"

    print("KERNEL_OK")
</pallas_src>

<mosaic_0001>
module attributes {stable_mosaic.version = 11 : i64} {
  func.func @rnn_direct_kernel(%arg0: memref<64x4xf32, #tpu.memory_space<vmem>>, %arg1: memref<8x128xf32, #tpu.memory_space<vmem>>, %arg2: memref<4x128xf32, #tpu.memory_space<vmem>>, %arg3: memref<128x128xf32, #tpu.memory_space<vmem>>, %arg4: memref<1x128xf32, #tpu.memory_space<vmem>>, %arg5: memref<128x128xf32, #tpu.memory_space<vmem>>, %arg6: memref<1x128xf32, #tpu.memory_space<vmem>>, %arg7: memref<8x128xf32, #tpu.memory_space<vmem>>, %arg8: memref<64x128xf32, #tpu.memory_space<vmem>>) attributes {dimension_semantics = [], scalar_prefetch = 0 : i64, scratch_operands = 1 : i64, tpu.core_type = #tpu.core_type<tc>} {
    %c0 = arith.constant 0 : index
    %c0_0 = arith.constant 0 : index
    %0 = vector.load %arg0[%c0, %c0_0] : memref<64x4xf32, #tpu.memory_space<vmem>>, vector<64x4xf32>
    %c0_1 = arith.constant 0 : index
    %c0_2 = arith.constant 0 : index
    %1 = vector.load %arg2[%c0_1, %c0_2] : memref<4x128xf32, #tpu.memory_space<vmem>>, vector<4x128xf32>
    %cst = arith.constant dense<0.000000e+00> : vector<64x128xf32>
    %2 = tpu.matmul %0, %1, %cst {dimension_numbers = #tpu.dot_dimension_numbers<[1], [0], [0], [1], [0, 0, 1, 1], [], []>} : vector<64x4xf32>, vector<4x128xf32>, vector<64x128xf32> -> vector<64x128xf32>
    %c0_3 = arith.constant 0 : index
    %c0_4 = arith.constant 0 : index
    %3 = vector.load %arg4[%c0_3, %c0_4] : memref<1x128xf32, #tpu.memory_space<vmem>>, vector<1x128xf32>
    %4 = vector.broadcast %3 : vector<1x128xf32> to vector<64x128xf32>
    %5 = arith.addf %2, %4 : vector<64x128xf32>
    %c0_5 = arith.constant 0 : index
    %c0_6 = arith.constant 0 : index
    %6 = vector.load %arg8[%c0_5, %c0_6] : memref<64x128xf32, #tpu.memory_space<vmem>>, vector<64x128xf32>
    tpu.vector_store %arg8[%c0_5, %c0_6], %5 {strides = array<i32>} : memref<64x128xf32, #tpu.memory_space<vmem>>, vector<64x128xf32>,
    %c0_7 = arith.constant 0 : index
    %c0_8 = arith.constant 0 : index
    %7 = vector.load %arg3[%c0_7, %c0_8] : memref<128x128xf32, #tpu.memory_space<vmem>>, vector<128x128xf32>
    %c0_9 = arith.constant 0 : index
    %c0_10 = arith.constant 0 : index
    %8 = vector.load %arg1[%c0_9, %c0_10] : memref<8x128xf32, #tpu.memory_space<vmem>>, vector<8x128xf32>
    %c0_i32 = arith.constant 0 : i32
    %c8_i32 = arith.constant 8 : i32
    %9 = arith.muli %c0_i32, %c8_i32 : i32
    %10 = tpu.assume_multiple %9, 8 : i32
    %11 = arith.index_cast %10 : i32 to index
    %c0_11 = arith.constant 0 : index
    %12 = vector.load %arg8[%11, %c0_11] : memref<64x128xf32, #tpu.memory_space<vmem>>, vector<8x128xf32>
    %cst_12 = arith.constant dense<0.000000e+00> : vector<8x128xf32>
    %13 = tpu.matmul %8, %7, %cst_12 {dimension_numbers = #tpu.dot_dimension_numbers<[1], [0], [0], [1], [0, 0, 1, 1], [], []>} : vector<8x128xf32>, vector<128x128xf32>, vector<8x128xf32> -> vector<8x128xf32>
    %14 = arith.addf %12, %13 : vector<8x128xf32>
    %15 = math.tanh %14 : vector<8x128xf32>
    %c1_i32 = arith.constant 1 : i32
    %c8_i32_13 = arith.constant 8 : i32
    %16 = arith.muli %c1_i32, %c8_i32_13 : i32
    %17 = tpu.assume_multiple %16, 8 : i32
    %18 = arith.index_cast %17 : i32 to index
    %c0_14 = arith.constant 0 : index
    %19 = vector.load %arg8[%18, %c0_14] : memref<64x128xf32, #tpu.memory_space<vmem>>, vector<8x128xf32>
    %cst_15 = arith.constant dense<0.000000e+00> : vector<8x128xf32>
    %20 = tpu.matmul %15, %7, %cst_15 {dimension_numbers = #tpu.dot_dimension_numbers<[1], [0], [0], [1], [0, 0, 1, 1], [], []>} : vector<8x128xf32>, vector<128x128xf32>, vector<8x128xf32> -> vector<8x128xf32>
    %21 = arith.addf %19, %20 : vector<8x128xf32>
    %22 = math.tanh %21 : vector<8x128xf32>
    %c2_i32 = arith.constant 2 : i32
    %c8_i32_16 = arith.constant 8 : i32
    %23 = arith.muli %c2_i32, %c8_i32_16 : i32
    %24 = tpu.assume_multiple %23, 8 : i32
    %25 = arith.index_cast %24 : i32 to index
    %c0_17 = arith.constant 0 : index
    %26 = vector.load %arg8[%25, %c0_17] : memref<64x128xf32, #tpu.memory_space<vmem>>, vector<8x128xf32>
    %cst_18 = arith.constant dense<0.000000e+00> : vector<8x128xf32>
    %27 = tpu.matmul %22, %7, %cst_18 {dimension_numbers = #tpu.dot_dimension_numbers<[1], [0], [0], [1], [0, 0, 1, 1], [], []>} : vector<8x128xf32>, vector<128x128xf32>, vector<8x128xf32> -> vector<8x128xf32>
    %28 = arith.addf %26, %27 : vector<8x128xf32>
    %29 = math.tanh %28 : vector<8x128xf32>
    %c3_i32 = arith.constant 3 : i32
    %c8_i32_19 = arith.constant 8 : i32
    %30 = arith.muli %c3_i32, %c8_i32_19 : i32
    %31 = tpu.assume_multiple %30, 8 : i32
    %32 = arith.index_cast %31 : i32 to index
    %c0_20 = arith.constant 0 : index
    %33 = vector.load %arg8[%32, %c0_20] : memref<64x128xf32, #tpu.memory_space<vmem>>, vector<8x128xf32>
    %cst_21 = arith.constant dense<0.000000e+00> : vector<8x128xf32>
    %34 = tpu.matmul %29, %7, %cst_21 {dimension_numbers = #tpu.dot_dimension_numbers<[1], [0], [0], [1], [0, 0, 1, 1], [], []>} : vector<8x128xf32>, vector<128x128xf32>, vector<8x128xf32> -> vector<8x128xf32>
    %35 = arith.addf %33, %34 : vector<8x128xf32>
    %36 = math.tanh %35 : vector<8x128xf32>
    %c4_i32 = arith.constant 4 : i32
    %c8_i32_22 = arith.constant 8 : i32
    %37 = arith.muli %c4_i32, %c8_i32_22 : i32
    %38 = tpu.assume_multiple %37, 8 : i32
    %39 = arith.index_cast %38 : i32 to index
    %c0_23 = arith.constant 0 : index
    %40 = vector.load %arg8[%39, %c0_23] : memref<64x128xf32, #tpu.memory_space<vmem>>, vector<8x128xf32>
    %cst_24 = arith.constant dense<0.000000e+00> : vector<8x128xf32>
    %41 = tpu.matmul %36, %7, %cst_24 {dimension_numbers = #tpu.dot_dimension_numbers<[1], [0], [0], [1], [0, 0, 1, 1], [], []>} : vector<8x128xf32>, vector<128x128xf32>, vector<8x128xf32> -> vector<8x128xf32>
    %42 = arith.addf %40, %41 : vector<8x128xf32>
    %43 = math.tanh %42 : vector<8x128xf32>
    %c5_i32 = arith.constant 5 : i32
    %c8_i32_25 = arith.constant 8 : i32
    %44 = arith.muli %c5_i32, %c8_i32_25 : i32
    %45 = tpu.assume_multiple %44, 8 : i32
    %46 = arith.index_cast %45 : i32 to index
    %c0_26 = arith.constant 0 : index
    %47 = vector.load %arg8[%46, %c0_26] : memref<64x128xf32, #tpu.memory_space<vmem>>, vector<8x128xf32>
    %cst_27 = arith.constant dense<0.000000e+00> : vector<8x128xf32>
    %48 = tpu.matmul %43, %7, %cst_27 {dimension_numbers = #tpu.dot_dimension_numbers<[1], [0], [0], [1], [0, 0, 1, 1], [], []>} : vector<8x128xf32>, vector<128x128xf32>, vector<8x128xf32> -> vector<8x128xf32>
    %49 = arith.addf %47, %48 : vector<8x128xf32>
    %50 = math.tanh %49 : vector<8x128xf32>
    %c6_i32 = arith.constant 6 : i32
    %c8_i32_28 = arith.constant 8 : i32
    %51 = arith.muli %c6_i32, %c8_i32_28 : i32
    %52 = tpu.assume_multiple %51, 8 : i32
    %53 = arith.index_cast %52 : i32 to index
    %c0_29 = arith.constant 0 : index
    %54 = vector.load %arg8[%53, %c0_29] : memref<64x128xf32, #tpu.memory_space<vmem>>, vector<8x128xf32>
    %cst_30 = arith.constant dense<0.000000e+00> : vector<8x128xf32>
    %55 = tpu.matmul %50, %7, %cst_30 {dimension_numbers = #tpu.dot_dimension_numbers<[1], [0], [0], [1], [0, 0, 1, 1], [], []>} : vector<8x128xf32>, vector<128x128xf32>, vector<8x128xf32> -> vector<8x128xf32>
    %56 = arith.addf %54, %55 : vector<8x128xf32>
    %57 = math.tanh %56 : vector<8x128xf32>
    %c7_i32 = arith.constant 7 : i32
    %c8_i32_31 = arith.constant 8 : i32
    %58 = arith.muli %c7_i32, %c8_i32_31 : i32
    %59 = tpu.assume_multiple %58, 8 : i32
    %60 = arith.index_cast %59 : i32 to index
    %c0_32 = arith.constant 0 : index
    %61 = vector.load %arg8[%60, %c0_32] : memref<64x128xf32, #tpu.memory_space<vmem>>, vector<8x128xf32>
    %cst_33 = arith.constant dense<0.000000e+00> : vector<8x128xf32>
    %62 = tpu.matmul %57, %7, %cst_33 {dimension_numbers = #tpu.dot_dimension_numbers<[1], [0], [0], [1], [0, 0, 1, 1], [], []>} : vector<8x128xf32>, vector<128x128xf32>, vector<8x128xf32> -> vector<8x128xf32>
    %63 = arith.addf %61, %62 : vector<8x128xf32>
    %64 = math.tanh %63 : vector<8x128xf32>
    %c8_i32_34 = arith.constant 8 : i32
    %c0_35 = arith.constant 0 : index
    %c0_36 = arith.constant 0 : index
    %65 = vector.load %arg5[%c0_35, %c0_36] : memref<128x128xf32, #tpu.memory_space<vmem>>, vector<128x128xf32>
    %cst_37 = arith.constant dense<0.000000e+00> : vector<8x128xf32>
    %66 = tpu.matmul %64, %65, %cst_37 {dimension_numbers = #tpu.dot_dimension_numbers<[1], [0], [0], [1], [0, 0, 1, 1], [], []>} : vector<8x128xf32>, vector<128x128xf32>, vector<8x128xf32> -> vector<8x128xf32>
    %c0_38 = arith.constant 0 : index
    %c0_39 = arith.constant 0 : index
    %67 = vector.load %arg6[%c0_38, %c0_39] : memref<1x128xf32, #tpu.memory_space<vmem>>, vector<1x128xf32>
    %68 = vector.broadcast %67 : vector<1x128xf32> to vector<8x128xf32>
    %69 = arith.addf %66, %68 : vector<8x128xf32>
    %c0_40 = arith.constant 0 : index
    %c0_41 = arith.constant 0 : index
    %70 = vector.load %arg7[%c0_40, %c0_41] : memref<8x128xf32, #tpu.memory_space<vmem>>, vector<8x128xf32>
    tpu.vector_store %arg7[%c0_40, %c0_41], %69 {strides = array<i32>} : memref<8x128xf32, #tpu.memory_space<vmem>>, vector<8x128xf32>,
    return
  }
}

</mosaic_0001>

<llo_original>
// kernel: tpu_custom_call.1
$region0: #{tpu_custom_call.1}
  #allocation0 [shape = 'u32[]', space=smem, size = 0x4, offset = 0x4, fixed_abs, tag = 'smem constant byte address 0x4 - core index']
  #allocation1 [shape = 'u32[72,128]{1,0:T(1,128)}', space=vmem, size = 0x9000, scoped, tag = 'internal scratch']
  #allocation2 [shape = 'f32[64,128]{1,0:T(8,128)}', space=vmem, size = 0x8000, scoped, tag = 'scratch operand']
  %s0 = inlined_call_operand.vmem [shape: f32[64,4], index: 0, kind: input, shape index: {}]
  %s1 = inlined_call_operand.vmem [shape: f32[8,128], index: 1, kind: input, shape index: {}]
  %s2 = inlined_call_operand.vmem [shape: f32[4,128], index: 2, kind: input, shape index: {}]
  %s3 = inlined_call_operand.hbm [shape: f32[128,128], index: 3, kind: input, shape index: {}]
  %s4 = inlined_call_operand.vmem [shape: f32[1,128], index: 4, kind: input, shape index: {}]
  %s5 = inlined_call_operand.hbm [shape: f32[128,128], index: 5, kind: input, shape index: {}]
  %s6 = inlined_call_operand.vmem [shape: f32[1,128], index: 6, kind: input, shape index: {}]
  %s7 = inlined_call_operand.hbm [shape: f32[8,128], index: 7, kind: output, shape index: {}]
  %s8 = sld [smem:[#allocation0]]
  $region46: #{tpu_custom_call.1} parent=0
    _
  %s10 = ssub.s32 1, %s8
  %s11 = scalar_select 0, %s10, %s8
  $region1: #{tpu_custom_call.1} parent=0
    #allocation3 [shape = 'u8[65536]{0}', space=vmem, size = 0x10000, scoped, tag = 'input window, operand 3, single buffered']
    #allocation4 [shape = 's32[1]{0}', space=sflag, size = 0x4, scoped, tag = 'scoped memory for tpu_custom_call.1']
    #allocation5 [shape = 's32[1]{0}', space=sflag, size = 0x4, scoped, tag = 'scoped memory for tpu_custom_call.1']
    #allocation6 [shape = 'u8[65536]{0}', space=vmem, size = 0x10000, scoped, tag = 'input window, operand 5, single buffered']
    #allocation7 [shape = 's32[1]{0}', space=sflag, size = 0x4, scoped, tag = 'scoped memory for tpu_custom_call.1']
    #allocation8 [shape = 'u8[4096]{0}', space=vmem, size = 0x1000, scoped, tag = 'output window, operand 0, single buffered']
    %12 = vsyncpa [#allocation4], 0
    %13 = vsyncpa [#allocation7], 0
    %14 = vsyncpa [#allocation5], 0
    // Predicated region
    $region2: #{tpu_custom_call.1} parent=1 // pred_check
      _
    $region3: #{tpu_custom_call.1} parent=1 // pred_check_branch
      %16 = sbr.rel (0) target = $region5
    $region4: #{tpu_custom_call.1} parent=1 // pred_region
      _
    $region5: #{tpu_custom_call.1} parent=1 // pred_fallthru
      _
    // Predicated region
    $region6: #{tpu_custom_call.1} parent=1 // pred_check
      _
    $region7: #{tpu_custom_call.1} parent=1 // pred_check_branch
      %18 = sbr.rel (0) target = $region9
    $region8: #{tpu_custom_call.1} parent=1 // pred_region
      _
    $region9: #{tpu_custom_call.1} parent=1 // pred_fallthru
      _
    // Predicated region
    $region10: #{tpu_custom_call.1} parent=1 // pred_check
      _
    $region11: #{tpu_custom_call.1} parent=1 // pred_check_branch
      %20 = sbr.rel (0) target = $region13
    $region12: #{tpu_custom_call.1} parent=1 // pred_region
      _
    $region13: #{tpu_custom_call.1} parent=1 // pred_fallthru
      _
    // Predicated region
    $region14: #{tpu_custom_call.1} parent=1 // pred_check
      _
    $region15: #{tpu_custom_call.1} parent=1 // pred_check_branch
      %22 = sbr.rel (0) target = $region17
    $region16: #{tpu_custom_call.1} parent=1 // pred_region
      %24 = vsyncadd [#allocation4], 0
      %s25 = sshll.u32 %s3, 4
      %s26 = int_to_ptr.hbm [resolvable:$true] %s25
      %s27 = sshll.u32 [#allocation3], 4
      %s28 = int_to_ptr.vmem [resolvable:$true] %s27
      %33 = dma.hbm_to_vmem [thread:$0]  %s26, 2048, %s28, [#allocation4], 128, 128, 8
    $region17: #{tpu_custom_call.1} parent=1 // pred_fallthru
      _
    // Predicated region
    $region18: #{tpu_custom_call.1} parent=1 // pred_check
      _
    $region19: #{tpu_custom_call.1} parent=1 // pred_check_branch
      %35 = sbr.rel (0) target = $region21
    $region20: #{tpu_custom_call.1} parent=1 // pred_region
      _
    $region21: #{tpu_custom_call.1} parent=1 // pred_fallthru
      _
    // Predicated region
    $region22: #{tpu_custom_call.1} parent=1 // pred_check
      _
    $region23: #{tpu_custom_call.1} parent=1 // pred_check_branch
      %37 = sbr.rel (0) target = $region25
    $region24: #{tpu_custom_call.1} parent=1 // pred_region
      %39 = vsyncadd [#allocation7], 0
      %s40 = sshll.u32 %s5, 4
      %s41 = int_to_ptr.hbm [resolvable:$true] %s40
      %s42 = sshll.u32 [#allocation6], 4
      %s43 = int_to_ptr.vmem [resolvable:$true] %s42
      %48 = dma.hbm_to_vmem [thread:$0]  %s41, 2048, %s43, [#allocation7], 128, 128, 8
    $region25: #{tpu_custom_call.1} parent=1 // pred_fallthru
      _
    // Predicated region
    $region26: #{tpu_custom_call.1} parent=1 // pred_check
      _
    $region27: #{tpu_custom_call.1} parent=1 // pred_check_branch
      %50 = sbr.rel (0) target = $region29
    $region28: #{tpu_custom_call.1} parent=1 // pred_region
      _
    $region29: #{tpu_custom_call.1} parent=1 // pred_fallthru
      _
    // Predicated region
    $region30: #{tpu_custom_call.1} parent=1 // pred_check
      _
    $region31: #{tpu_custom_call.1} parent=1 // pred_check_branch
      %52 = sbr.rel (0) target = $region33
    $region32: #{tpu_custom_call.1} parent=1 // pred_region
      %54 = dma.done [#allocation4], 2048
    $region33: #{tpu_custom_call.1} parent=1 // pred_fallthru
      _
    // Predicated region
    $region34: #{tpu_custom_call.1} parent=1 // pred_check
      _
    $region35: #{tpu_custom_call.1} parent=1 // pred_check_branch
      %56 = sbr.rel (0) target = $region37
    $region36: #{tpu_custom_call.1} parent=1 // pred_region
      %58 = dma.done [#allocation7], 2048
    $region37: #{tpu_custom_call.1} parent=1 // pred_fallthru
      _
    %v59 = vld [vmem:[%s0] sm:$0xff]
    %v60 = vld [vmem:[%s0 + $0x8] sm:$0xff]
    %v61 = vld [vmem:[%s0 + $0x10] sm:$0xff]
    %v62 = vld [vmem:[%s0 + $0x18] sm:$0xff]
    %v63 = vld [vmem:[%s0 + $0x20] sm:$0xff]
    %v64 = vld [vmem:[%s0 + $0x28] sm:$0xff]
    %v65 = vld [vmem:[%s0 + $0x30] sm:$0xff]
    %v66 = vld [vmem:[%s0 + $0x38] sm:$0xff]
    %v67 = vld [vmem:[%s2] sm:$0xf]
    %v68 = vld [vmem:[%s4] sm:$0x1]
    %v70 = vperm.slane %v68, 0
    %vm72 = vcmask 31744
    %v74 = vsel %vm72, %v59, 0
    %v77 = vsel %vm72, %v60, 0
    %v80 = vsel %vm72, %v61, 0
    %v83 = vsel %vm72, %v62, 0
    %v86 = vsel %vm72, %v63, 0
    %v89 = vsel %vm72, %v64, 0
    %v92 = vsel %vm72, %v65, 0
    %v95 = vsel %vm72, %v66, 0
    %vm97 = vcmask 1043456
    %v99 = vsel %vm97, %v67, 0
    %101 = vmatpush.msra.mxu0 0.0
    %102 = vmatpush.msra.mxu0 0.0
    %103 = vmatpush.msra.mxu0 0.0
    %104 = vmatpush.msra.mxu0 0.0
    %105 = vmatpush.msra.mxu0 0.0
    %106 = vmatpush.msra.mxu0 0.0
    %107 = vmatpush.msra.mxu0 0.0
    %108 = vmatpush.msra.mxu0 0.0
    %109 = vmatpush.msra.mxu0 0.0
    %110 = vmatpush.msra.mxu0 0.0
    %111 = vmatpush.msra.mxu0 0.0
    %112 = vmatpush.msra.mxu0 0.0
    %113 = vmatpush.msra.mxu0 0.0
    %114 = vmatpush.msra.mxu0 0.0
    %115 = vmatpush.msra.mxu0 0.0
    %116 = vmatpush.msra.mxu0 %v99
    %117 = vmatmul.f32.gmra.mxu0 %v74
    %v118 = vpop.f32.mrf.mxu0
    %v119 = vadd.f32 %v70, %v118
    %120 = vmatmul.f32.gmra.mxu0 %v77
    %v121 = vpop.f32.mrf.mxu0
    %v122 = vadd.f32 %v70, %v121
    %123 = vmatmul.f32.gmra.mxu0 %v80
    %v124 = vpop.f32.mrf.mxu0
    %v125 = vadd.f32 %v70, %v124
    %126 = vmatmul.f32.gmra.mxu0 %v83
    %v127 = vpop.f32.mrf.mxu0
    %v128 = vadd.f32 %v70, %v127
    %129 = vmatmul.f32.gmra.mxu0 %v86
    %v130 = vpop.f32.mrf.mxu0
    %v131 = vadd.f32 %v70, %v130
    %132 = vmatmul.f32.gmra.mxu0 %v89
    %v133 = vpop.f32.mrf.mxu0
    %v134 = vadd.f32 %v70, %v133
    %135 = vmatmul.f32.gmra.mxu0 %v92
    %v136 = vpop.f32.mrf.mxu0
    %v137 = vadd.f32 %v70, %v136
    %138 = vmatmul.f32.gmra.mxu0 %v95
    %v139 = vpop.f32.mrf.mxu0
    %v140 = vadd.f32 %v70, %v139
    %141 = vdwg.mxu0
    %142 = vst [vmem:[#allocation2] sm:$0xff] %v119
    %143 = vst [vmem:[#allocation2 + $0x8] sm:$0xff] %v122
    %144 = vst [vmem:[#allocation2 + $0x10] sm:$0xff] %v125
    %145 = vst [vmem:[#allocation2 + $0x18] sm:$0xff] %v128
    %146 = vst [vmem:[#allocation2 + $0x20] sm:$0xff] %v131
    %147 = vst [vmem:[#allocation2 + $0x28] sm:$0xff] %v134
    %148 = vst [vmem:[#allocation2 + $0x30] sm:$0xff] %v137
    %149 = vst [vmem:[#allocation2 + $0x38] sm:$0xff] %v140
    %v150 = vld [vmem:[#allocation3] sm:$0xff]
    %v151 = vld [vmem:[#allocation3 + $0x8] sm:$0xff]
    %v152 = vld [vmem:[#allocation3 + $0x10] sm:$0xff]
    %v153 = vld [vmem:[#allocation3 + $0x18] sm:$0xff]
    %v154 = vld [vmem:[#allocation3 + $0x20] sm:$0xff]
    %v155 = vld [vmem:[#allocation3 + $0x28] sm:$0xff]
    %v156 = vld [vmem:[#allocation3 + $0x30] sm:$0xff]
    %v157 = vld [vmem:[#allocation3 + $0x38] sm:$0xff]
    %v158 = vld [vmem:[#allocation3 + $0x40] sm:$0xff]
    %v159 = vld [vmem:[#allocation3 + $0x48] sm:$0xff]
    %v160 = vld [vmem:[#allocation3 + $0x50] sm:$0xff]
    %v161 = vld [vmem:[#allocation3 + $0x58] sm:$0xff]
    %v162 = vld [vmem:[#allocation3 + $0x60] sm:$0xff]
    %v163 = vld [vmem:[#allocation3 + $0x68] sm:$0xff]
    %v164 = vld [vmem:[#allocation3 + $0x70] sm:$0xff]
    %v165 = vld [vmem:[#allocation3 + $0x78] sm:$0xff]
    %v166 = vld [vmem:[%s1] sm:$0xff]
    %v167 = vld [vmem:[#allocation2] sm:$0xff]
    %168 = vmatpush.msra.mxu0 %v165
    %169 = vmatpush.msra.mxu0 %v164
    %170 = vmatpush.msra.mxu0 %v163
    %171 = vmatpush.msra.mxu0 %v162
    %172 = vmatpush.msra.mxu0 %v161
    %173 = vmatpush.msra.mxu0 %v160
    %174 = vmatpush.msra.mxu0 %v159
    %175 = vmatpush.msra.mxu0 %v158
    %176 = vmatpush.msra.mxu0 %v157
    %177 = vmatpush.msra.mxu0 %v156
    %178 = vmatpush.msra.mxu0 %v155
    %179 = vmatpush.msra.mxu0 %v154
    %180 = vmatpush.msra.mxu0 %v153
    %181 = vmatpush.msra.mxu0 %v152
    %182 = vmatpush.msra.mxu0 %v151
    %183 = vmatpush.msra.mxu0 %v150
    %184 = vmatmul.f32.gmra.mxu0 %v166
    %v185 = vpop.f32.mrf.mxu0
    %v186 = vadd.f32 0.0, %v185
    %187 = vdwg.mxu0
    %v188 = vadd.f32 %v167, %v186
    %v189 = vtanh.pop %v188
    %s190 = scalar_lea.vmem [#allocation2], 8
    %v191 = vld [vmem:[%s190] sm:$0xff]
    %192 = vmatpush.msra.mxu0 %v165
    %193 = vmatpush.msra.mxu0 %v164
    %194 = vmatpush.msra.mxu0 %v163
    %195 = vmatpush.msra.mxu0 %v162
    %196 = vmatpush.msra.mxu0 %v161
    %197 = vmatpush.msra.mxu0 %v160
    %198 = vmatpush.msra.mxu0 %v159
    %199 = vmatpush.msra.mxu0 %v158
    %200 = vmatpush.msra.mxu0 %v157
    %201 = vmatpush.msra.mxu0 %v156
    %202 = vmatpush.msra.mxu0 %v155
    %203 = vmatpush.msra.mxu0 %v154
    %204 = vmatpush.msra.mxu0 %v153
    %205 = vmatpush.msra.mxu0 %v152
    %206 = vmatpush.msra.mxu0 %v151
    %207 = vmatpush.msra.mxu0 %v150
    %208 = vmatmul.f32.gmra.mxu0 %v189
    %v209 = vpop.f32.mrf.mxu0
    %v210 = vadd.f32 0.0, %v209
    %211 = vdwg.mxu0
    %v212 = vadd.f32 %v191, %v210
    %v213 = vtanh.pop %v212
    %s214 = scalar_lea.vmem [#allocation2], 16
    %v215 = vld [vmem:[%s214] sm:$0xff]
    %216 = vmatpush.msra.mxu0 %v165
    %217 = vmatpush.msra.mxu0 %v164
    %218 = vmatpush.msra.mxu0 %v163
    %219 = vmatpush.msra.mxu0 %v162
    %220 = vmatpush.msra.mxu0 %v161
    %221 = vmatpush.msra.mxu0 %v160
    %222 = vmatpush.msra.mxu0 %v159
    %223 = vmatpush.msra.mxu0 %v158
    %224 = vmatpush.msra.mxu0 %v157
    %225 = vmatpush.msra.mxu0 %v156
    %226 = vmatpush.msra.mxu0 %v155
    %227 = vmatpush.msra.mxu0 %v154
    %228 = vmatpush.msra.mxu0 %v153
    %229 = vmatpush.msra.mxu0 %v152
    %230 = vmatpush.msra.mxu0 %v151
    %231 = vmatpush.msra.mxu0 %v150
    %232 = vmatmul.f32.gmra.mxu0 %v213
    %v233 = vpop.f32.mrf.mxu0
    %v234 = vadd.f32 0.0, %v233
    %235 = vdwg.mxu0
    %v236 = vadd.f32 %v215, %v234
    %v237 = vtanh.pop %v236
    %s238 = scalar_lea.vmem [#allocation2], 24
    %v239 = vld [vmem:[%s238] sm:$0xff]
    %240 = vmatpush.msra.mxu0 %v165
    %241 = vmatpush.msra.mxu0 %v164
    %242 = vmatpush.msra.mxu0 %v163
    %243 = vmatpush.msra.mxu0 %v162
    %244 = vmatpush.msra.mxu0 %v161
    %245 = vmatpush.msra.mxu0 %v160
    %246 = vmatpush.msra.mxu0 %v159
    %247 = vmatpush.msra.mxu0 %v158
    %248 = vmatpush.msra.mxu0 %v157
    %249 = vmatpush.msra.mxu0 %v156
    %250 = vmatpush.msra.mxu0 %v155
    %251 = vmatpush.msra.mxu0 %v154
    %252 = vmatpush.msra.mxu0 %v153
    %253 = vmatpush.msra.mxu0 %v152
    %254 = vmatpush.msra.mxu0 %v151
    %255 = vmatpush.msra.mxu0 %v150
    %256 = vmatmul.f32.gmra.mxu0 %v237
    %v257 = vpop.f32.mrf.mxu0
    %v258 = vadd.f32 0.0, %v257
    %259 = vdwg.mxu0
    %v260 = vadd.f32 %v239, %v258
    %v261 = vtanh.pop %v260
    %s262 = scalar_lea.vmem [#allocation2], 32
    %v263 = vld [vmem:[%s262] sm:$0xff]
    %264 = vmatpush.msra.mxu0 %v165
    %265 = vmatpush.msra.mxu0 %v164
    %266 = vmatpush.msra.mxu0 %v163
    %267 = vmatpush.msra.mxu0 %v162
    %268 = vmatpush.msra.mxu0 %v161
    %269 = vmatpush.msra.mxu0 %v160
    %270 = vmatpush.msra.mxu0 %v159
    %271 = vmatpush.msra.mxu0 %v158
    %272 = vmatpush.msra.mxu0 %v157
    %273 = vmatpush.msra.mxu0 %v156
    %274 = vmatpush.msra.mxu0 %v155
    %275 = vmatpush.msra.mxu0 %v154
    %276 = vmatpush.msra.mxu0 %v153
    %277 = vmatpush.msra.mxu0 %v152
    %278 = vmatpush.msra.mxu0 %v151
    %279 = vmatpush.msra.mxu0 %v150
    %280 = vmatmul.f32.gmra.mxu0 %v261
    %v281 = vpop.f32.mrf.mxu0
    %v282 = vadd.f32 0.0, %v281
    %283 = vdwg.mxu0
    %v284 = vadd.f32 %v263, %v282
    %v285 = vtanh.pop %v284
    %s286 = scalar_lea.vmem [#allocation2], 40
    %v287 = vld [vmem:[%s286] sm:$0xff]
    %288 = vmatpush.msra.mxu0 %v165
    %289 = vmatpush.msra.mxu0 %v164
    %290 = vmatpush.msra.mxu0 %v163
    %291 = vmatpush.msra.mxu0 %v162
    %292 = vmatpush.msra.mxu0 %v161
    %293 = vmatpush.msra.mxu0 %v160
    %294 = vmatpush.msra.mxu0 %v159
    %295 = vmatpush.msra.mxu0 %v158
    %296 = vmatpush.msra.mxu0 %v157
    %297 = vmatpush.msra.mxu0 %v156
    %298 = vmatpush.msra.mxu0 %v155
    %299 = vmatpush.msra.mxu0 %v154
    %300 = vmatpush.msra.mxu0 %v153
    %301 = vmatpush.msra.mxu0 %v152
    %302 = vmatpush.msra.mxu0 %v151
    %303 = vmatpush.msra.mxu0 %v150
    %304 = vmatmul.f32.gmra.mxu0 %v285
    %v305 = vpop.f32.mrf.mxu0
    %v306 = vadd.f32 0.0, %v305
    %307 = vdwg.mxu0
    %v308 = vadd.f32 %v287, %v306
    %v309 = vtanh.pop %v308
    %s310 = scalar_lea.vmem [#allocation2], 48
    %v311 = vld [vmem:[%s310] sm:$0xff]
    %312 = vmatpush.msra.mxu0 %v165
    %313 = vmatpush.msra.mxu0 %v164
    %314 = vmatpush.msra.mxu0 %v163
    %315 = vmatpush.msra.mxu0 %v162
    %316 = vmatpush.msra.mxu0 %v161
    %317 = vmatpush.msra.mxu0 %v160
    %318 = vmatpush.msra.mxu0 %v159
    %319 = vmatpush.msra.mxu0 %v158
    %320 = vmatpush.msra.mxu0 %v157
    %321 = vmatpush.msra.mxu0 %v156
    %322 = vmatpush.msra.mxu0 %v155
    %323 = vmatpush.msra.mxu0 %v154
    %324 = vmatpush.msra.mxu0 %v153
    %325 = vmatpush.msra.mxu0 %v152
    %326 = vmatpush.msra.mxu0 %v151
    %327 = vmatpush.msra.mxu0 %v150
    %328 = vmatmul.f32.gmra.mxu0 %v309
    %v329 = vpop.f32.mrf.mxu0
    %v330 = vadd.f32 0.0, %v329
    %331 = vdwg.mxu0
    %v332 = vadd.f32 %v311, %v330
    %v333 = vtanh.pop %v332
    %s334 = scalar_lea.vmem [#allocation2], 56
    %v335 = vld [vmem:[%s334] sm:$0xff]
    %336 = vmatpush.msra.mxu0 %v165
    %337 = vmatpush.msra.mxu0 %v164
    %338 = vmatpush.msra.mxu0 %v163
    %339 = vmatpush.msra.mxu0 %v162
    %340 = vmatpush.msra.mxu0 %v161
    %341 = vmatpush.msra.mxu0 %v160
    %342 = vmatpush.msra.mxu0 %v159
    %343 = vmatpush.msra.mxu0 %v158
    %344 = vmatpush.msra.mxu0 %v157
    %345 = vmatpush.msra.mxu0 %v156
    %346 = vmatpush.msra.mxu0 %v155
    %347 = vmatpush.msra.mxu0 %v154
    %348 = vmatpush.msra.mxu0 %v153
    %349 = vmatpush.msra.mxu0 %v152
    %350 = vmatpush.msra.mxu0 %v151
    %351 = vmatpush.msra.mxu0 %v150
    %352 = vmatmul.f32.gmra.mxu0 %v333
    %v353 = vpop.f32.mrf.mxu0
    %v354 = vadd.f32 0.0, %v353
    %355 = vdwg.mxu0
    %v356 = vadd.f32 %v335, %v354
    %v357 = vtanh.pop %v356
    %v358 = vld [vmem:[#allocation6] sm:$0xff]
    %v359 = vld [vmem:[#allocation6 + $0x8] sm:$0xff]
    %v360 = vld [vmem:[#allocation6 + $0x10] sm:$0xff]
    %v361 = vld [vmem:[#allocation6 + $0x18] sm:$0xff]
    %v362 = vld [vmem:[#allocation6 + $0x20] sm:$0xff]
    %v363 = vld [vmem:[#allocation6 + $0x28] sm:$0xff]
    %v364 = vld [vmem:[#allocation6 + $0x30] sm:$0xff]
    %v365 = vld [vmem:[#allocation6 + $0x38] sm:$0xff]
    %v366 = vld [vmem:[#allocation6 + $0x40] sm:$0xff]
    %v367 = vld [vmem:[#allocation6 + $0x48] sm:$0xff]
    %v368 = vld [vmem:[#allocation6 + $0x50] sm:$0xff]
    %v369 = vld [vmem:[#allocation6 + $0x58] sm:$0xff]
    %v370 = vld [vmem:[#allocation6 + $0x60] sm:$0xff]
    %v371 = vld [vmem:[#allocation6 + $0x68] sm:$0xff]
    %v372 = vld [vmem:[#allocation6 + $0x70] sm:$0xff]
    %v373 = vld [vmem:[#allocation6 + $0x78] sm:$0xff]
    %v374 = vld [vmem:[%s6] sm:$0x1]
    %v376 = vperm.slane %v374, 0
    %378 = vmatpush.msra.mxu0 %v373
    %379 = vmatpush.msra.mxu0 %v372
    %380 = vmatpush.msra.mxu0 %v371
    %381 = vmatpush.msra.mxu0 %v370
    %382 = vmatpush.msra.mxu0 %v369
    %383 = vmatpush.msra.mxu0 %v368
    %384 = vmatpush.msra.mxu0 %v367
    %385 = vmatpush.msra.mxu0 %v366
    %386 = vmatpush.msra.mxu0 %v365
    %387 = vmatpush.msra.mxu0 %v364
    %388 = vmatpush.msra.mxu0 %v363
    %389 = vmatpush.msra.mxu0 %v362
    %390 = vmatpush.msra.mxu0 %v361
    %391 = vmatpush.msra.mxu0 %v360
    %392 = vmatpush.msra.mxu0 %v359
    %393 = vmatpush.msra.mxu0 %v358
    %394 = vmatmul.f32.gmra.mxu0 %v357
    %v395 = vpop.f32.mrf.mxu0
    %v396 = vadd.f32 %v376, %v395
    %397 = vdwg.mxu0
    %398 = vst [vmem:[#allocation8] sm:$0xff] %v396
    // Predicated region
    $region38: #{tpu_custom_call.1} parent=1 // pred_check
      _
    $region39: #{tpu_custom_call.1} parent=1 // pred_check_branch
      %400 = sbr.rel (0) target = $region41
    $region40: #{tpu_custom_call.1} parent=1 // pred_region
      %402 = vsyncadd [#allocation5], 0
      %s404 = sshll.u32 [#allocation8], 4
      %s405 = int_to_ptr.vmem [resolvable:$true] %s404
      %s406 = sshll.u32 %s7, 4
      %s407 = int_to_ptr.hbm [resolvable:$true] %s406
      %409 = dma.vmem_to_hbm [thread:$0]  %s405, 128, %s407, [#allocation5]
    $region41: #{tpu_custom_call.1} parent=1 // pred_fallthru
      _
    // Predicated region
    $region42: #{tpu_custom_call.1} parent=1 // pred_check
      _
    $region43: #{tpu_custom_call.1} parent=1 // pred_check_branch
      %411 = sbr.rel (0) target = $region45
    $region44: #{tpu_custom_call.1} parent=1 // pred_region
      %413 = dma.done [#allocation5], 128
    $region45: #{tpu_custom_call.1} parent=1 // pred_fallthru
      _
    %414 = vsyncpa [#allocation4], 1
    %415 = vsyncpa [#allocation7], 1
    %416 = vsyncpa [#allocation5], 1

</llo_original>
